<compile_context>
chip_gen: v7x
topology: tpu7x:2x2x1
jax: 0.10.0
libtpu: 0.0.40
codegen_flags: <defaults>
</compile_context>

<pallas_src>
import functools
import math

import jax
import jax.numpy as jnp
from jax.experimental import pallas as pl
from jax.experimental.pallas import tpu as pltpu


def _round_up(n, m):
    return ((n + m - 1) // m) * m


# ---------------------- kernel 1: fused MLP (+ softmax epilogue) ----------------------

def _mlp_kernel(*refs, num_layers, num_valid):
    # refs = x, (w0, b0), ..., (w_{L-1}, b_{L-1}), h_out, probs_out
    x_ref = refs[0]
    h_ref = refs[1 + 2 * num_layers]
    p_ref = refs[2 + 2 * num_layers]

    h = x_ref[...].astype(jnp.float32)
    for l in range(num_layers):                       # static unroll over layers
        w = refs[1 + 2 * l][...]
        b = refs[2 + 2 * l][...]
        h = jnp.dot(h, w, preferred_element_type=jnp.float32) + b
        if l < num_layers - 1:
            h = jnp.maximum(h, 0.0)                   # ReLU (dropout = id in eval mode)
    h_ref[...] = h.astype(h_ref.dtype)

    # Fused epilogue: row softmax over the first `num_valid` lanes (rest = zero pad).
    lane = jax.lax.broadcasted_iota(jnp.int32, h.shape, 1)
    valid = lane < num_valid
    m = jnp.max(jnp.where(valid, h, -1e30), axis=-1, keepdims=True)
    e = jnp.where(valid, jnp.exp(h - m), 0.0)
    s = jnp.sum(e, axis=-1, keepdims=True)
    p_ref[...] = (e / s).astype(p_ref.dtype)


def fused_mlp_softmax(x_pad, params_pad, *, num_valid, row_tile):
    n_pad, fin = x_pad.shape
    c_pad = params_pad[-1][0].shape[1]
    num_layers = len(params_pad)

    in_specs = [pl.BlockSpec((row_tile, fin), lambda i: (i, 0))]
    inputs = [x_pad]
    for w_t, b in params_pad:                          # loop-invariant, tiny, stay resident
        fi, fo = w_t.shape
        in_specs.append(pl.BlockSpec((fi, fo), lambda i: (0, 0)))
        in_specs.append(pl.BlockSpec((1, fo), lambda i: (0, 0)))
        inputs.append(w_t)
        inputs.append(b.reshape(1, fo))

    out_shape = (jax.ShapeDtypeStruct((n_pad, c_pad), jnp.float32),
                 jax.ShapeDtypeStruct((n_pad, c_pad), jnp.float32))
    out_specs = [pl.BlockSpec((row_tile, c_pad), lambda i: (i, 0)),
                 pl.BlockSpec((row_tile, c_pad), lambda i: (i, 0))]

    return pl.pallas_call(
        functools.partial(_mlp_kernel, num_layers=num_layers, num_valid=num_valid),
        out_shape=out_shape,
        grid_spec=pltpu.PrefetchScalarGridSpec(
            num_scalar_prefetch=0,
            grid=(n_pad // row_tile,),
            in_specs=in_specs,
            out_specs=out_specs),
        compiler_params=pltpu.CompilerParams(dimension_semantics=("parallel",)),
    )(*inputs)


# --------------- kernel 2: APPNP propagation (+ fused softmax / log_softmax) ---------------

def _prop_kernel(h_ref, a_hbm, probs_ref, logp_ref, a_vmem, sem, *,
                 alpha, K, num_valid):
    # Loop-invariant adjacency: one manual DMA into a SINGLE-buffered VMEM scratch
    # (avoids the auto-pipeline's double buffer -> halves the on-chip A footprint).
    cp = pltpu.make_async_copy(a_hbm, a_vmem, sem)
    cp.start()
    cp.wait()

    h = h_ref[...].astype(jnp.float32)
    a = a_vmem[...]                                    # bf16 operand, f32 accumulate below
    x = h
    for _ in range(K):                                 # K is small & static: full unroll
        x = (1.0 - alpha) * jnp.dot(a, x.astype(jnp.bfloat16),
                                    preferred_element_type=jnp.float32) + alpha * h

    # Fused epilogue: softmax (new data.f) and log_softmax (return value) computed
    # once from a shared max/exp/sum reduction, both lane-dense (c_pad = 128).
    lane = jax.lax.broadcasted_iota(jnp.int32, x.shape, 1)
    valid = lane < num_valid
    m = jnp.max(jnp.where(valid, x, -1e30), axis=-1, keepdims=True)
    e = jnp.where(valid, jnp.exp(x - m), 0.0)
    s = jnp.sum(e, axis=-1, keepdims=True)
    probs_ref[...] = (e / s).astype(probs_ref.dtype)
    logp_ref[...] = ((x - m) - jnp.log(s)).astype(logp_ref.dtype)


def appnp_propagate_softmax(h_pad, adj_pad_bf16, *, alpha, K, num_valid):
    n_pad, c_pad = h_pad.shape
    return pl.pallas_call(
        functools.partial(_prop_kernel, alpha=alpha, K=K, num_valid=num_valid),
        out_shape=(jax.ShapeDtypeStruct((n_pad, c_pad), jnp.float32),
                   jax.ShapeDtypeStruct((n_pad, c_pad), jnp.float32)),
        grid_spec=pltpu.PrefetchScalarGridSpec(
            num_scalar_prefetch=0,
            grid=(1,),
            in_specs=[pl.BlockSpec((n_pad, c_pad), lambda i: (0, 0)),
                      pl.BlockSpec(memory_space=pl.ANY)],   # A stays in HBM; manual DMA
            out_specs=[pl.BlockSpec((n_pad, c_pad), lambda i: (0, 0)),
                       pl.BlockSpec((n_pad, c_pad), lambda i: (0, 0))],
            scratch_shapes=[pltpu.VMEM((n_pad, n_pad), jnp.bfloat16),
                            pltpu.SemaphoreType.DMA]),
        compiler_params=pltpu.CompilerParams(
            dimension_semantics=("arbitrary",),
            vmem_limit_bytes=48 * 1024 * 1024),
    )(h_pad, adj_pad_bf16)


# ------------------------------------- APPNP forward -------------------------------------

def appnp_forward(x, adj, params, *, alpha=0.1, K=10, f=None, train_mask=None,
                  num_classes=None, topk=70, row_tile=512):
    """Reproduces APPNP.forward(data). Returns (log_softmax(x), loss1, new_f).

    data.x -> x, data.adj_t -> adj (dense GCN-normalized), data.f -> f,
    data.train_mask -> train_mask. `num_classes` is a static Python int replacing
    data.y.max()+1 (no host sync). Dropout is the identity (eval mode).
    """
    N, _ = x.shape
    out_c = params[-1][0].shape[1]
    c_pad = _round_up(out_c, 128)

    # Zero-pad the final layer so every kernel output is lane-dense (128 lanes).
    w_last, b_last = params[-1]
    if out_c != c_pad:
        w_last = jnp.pad(w_last, ((0, 0), (0, c_pad - out_c)))
        b_last = jnp.pad(b_last, (0, c_pad - out_c))
    params_pad = list(params[:-1]) + [(w_last, b_last)]

    # Row padding so a large row tile always divides the grid (no tn=N fallback).
    tn = min(row_tile, _round_up(N, 8))
    n_pad = _round_up(N, tn)
    x_p = jnp.pad(x, ((0, n_pad - N), (0, 0))) if n_pad != N else x

    # (1) Fused MLP (all lins + ReLU + bias) + softmax epilogue: one pallas_call.
    h_pad, probs_mlp_pad = fused_mlp_softmax(x_p, params_pad,
                                             num_valid=out_c, row_tile=tn)

    # (2) Weighted-loss branch (plain JAX glue).
    if f is None:
        diff = jnp.zeros((N, out_c), jnp.float32)
        loss1 = jnp.sum(diff * diff)
    else:
        assert num_classes is not None and train_mask is not None
        label = f
        probs = probs_mlp_pad[:N, :out_c]              # softmax(h) from fused epilogue
        total_weight = jnp.where(train_mask, 1.0, 0.0).astype(jnp.float32)
        entropy = -jnp.sum(label * jnp.log(jnp.clip(label, 1e-8)), axis=1)
        base_w = 1.0 - entropy / math.log(num_classes)
        index = jnp.argmax(label, axis=1)
        for i in range(num_classes):
            weight = jnp.where(index == i, base_w, 0.0)
            weight = jnp.where(train_mask, 0.0, weight)
            # TODO(synk): torch.topk + scatter have no clean Pallas equivalent; plain JAX.
            value, indices = jax.lax.top_k(weight, topk)
            total_weight = total_weight.at[indices].set(value)
        diff = label - probs
        diff = jnp.sum(diff * diff, axis=1)
        loss1 = jnp.sum(total_weight * diff)

    # (3) Propagation + fused softmax/log_softmax epilogue: one pallas_call.
    adj_p = jnp.pad(adj, ((0, n_pad - N), (0, n_pad - N))) if n_pad != N else adj
    adj_bf16 = adj_p.astype(jnp.bfloat16)              # bf16 MXU operands, f32 accumulate
    probs_pad, logp_pad = appnp_propagate_softmax(h_pad, adj_bf16,
                                                  alpha=alpha, K=K, num_valid=out_c)

    new_f = probs_pad[:N, :out_c]                      # data.f = softmax(x.detach())
    log_probs = logp_pad[:N, :out_c]                   # F.log_softmax(x, dim=1)
    return log_probs, loss1, new_f


# ------------------------------------ setup helpers ------------------------------------

def init_params(key, in_channels, hidden, out_channels, num_layers):
    """Deterministic torch.nn.Linear-style init (uniform +/- 1/sqrt(fan_in))."""
    dims = [in_channels] + [hidden] * (num_layers - 1) + [out_channels]
    params = []
    for i in range(num_layers):
        fin, fout = dims[i], dims[i + 1]
        key, k_w, k_b = jax.random.split(key, 3)
        bound = 1.0 / math.sqrt(fin)
        w = jax.random.uniform(k_w, (fout, fin), jnp.float32, -bound, bound)
        b = jax.random.uniform(k_b, (fout,), jnp.float32, -bound, bound)
        params.append((w.T, b))  # store W^T so kernels compute x @ W^T + b
    return params


def make_adj(key, n, avg_deg=8):
    """Random symmetric graph + self loops, GCN (D^-1/2 (A+I) D^-1/2) normalized."""
    p = avg_deg / n
    a = (jax.random.uniform(key, (n, n)) < p).astype(jnp.float32)
    a = jnp.minimum(jnp.maximum(a, a.T) + jnp.eye(n, dtype=jnp.float32), 1.0)
    deg = jnp.sum(a, axis=1)
    d_inv_sqrt = 1.0 / jnp.sqrt(deg)
    return a * d_inv_sqrt[:, None] * d_inv_sqrt[None, :]


# ----------------------------------------- main -----------------------------------------

if __name__ == "__main__":
    N, IN_C, HID, OUT_C, NUM_LAYERS = 128, 32, 64, 16, 3
    ALPHA, K_ITERS = 0.1, 10

    key = jax.random.PRNGKey(0)
    k_x, k_adj, k_p, k_m = jax.random.split(key, 4)

    x = jax.random.normal(k_x, (N, IN_C), jnp.float32)
    adj = make_adj(k_adj, N)
    params = init_params(k_p, IN_C, HID, OUT_C, NUM_LAYERS)
    train_mask = jax.random.uniform(k_m, (N,)) < 0.3

    # First forward pass: data.f is None -> loss1 == 0 branch.
    log_probs, loss1, f = appnp_forward(x, adj, params, alpha=ALPHA, K=K_ITERS, f=None)
    jax.block_until_ready((log_probs, loss1, f))
    assert log_probs.shape == (N, OUT_C) and f.shape == (N, OUT_C)
    assert bool(jnp.all(jnp.isfinite(log_probs)))
    assert bool(jnp.allclose(jnp.sum(f, axis=1), 1.0, atol=1e-3))

    # Second forward pass: data.f is set -> exercises the weighted-loss branch.
    log_probs2, loss2, f2 = appnp_forward(
        x, adj, params, alpha=ALPHA, K=K_ITERS,
        f=f, train_mask=train_mask, num_classes=OUT_C)
    jax.block_until_ready((log_probs2, loss2, f2))
    assert bool(jnp.isfinite(loss2))

    print("KERNEL_OK")
</pallas_src>

<mosaic_0001>
module attributes {stable_mosaic.version = 11 : i64} {
  func.func @_mlp_kernel(%arg0: i32, %arg1: memref<128x32xf32, #tpu.memory_space<vmem>>, %arg2: memref<32x64xf32, #tpu.memory_space<vmem>>, %arg3: memref<1x64xf32, #tpu.memory_space<vmem>>, %arg4: memref<64x64xf32, #tpu.memory_space<vmem>>, %arg5: memref<1x64xf32, #tpu.memory_space<vmem>>, %arg6: memref<64x128xf32, #tpu.memory_space<vmem>>, %arg7: memref<1x128xf32, #tpu.memory_space<vmem>>, %arg8: memref<128x128xf32, #tpu.memory_space<vmem>>, %arg9: memref<128x128xf32, #tpu.memory_space<vmem>>) attributes {dimension_semantics = [#tpu.dimension_semantics<parallel>], iteration_bounds = array<i64: 1>, scalar_prefetch = 0 : i64, scratch_operands = 0 : i64, tpu.core_type = #tpu.core_type<tc>, window_params = [{transform_indices = @transform_0, window_bounds = array<i64: 128, 32>}, {pipeline_mode = #tpu.pipeline_mode<synchronous>, transform_indices = @transform_1, window_bounds = array<i64: 32, 64>}, {pipeline_mode = #tpu.pipeline_mode<synchronous>, transform_indices = @transform_2, window_bounds = array<i64: 1, 64>}, {pipeline_mode = #tpu.pipeline_mode<synchronous>, transform_indices = @transform_3, window_bounds = array<i64: 64, 64>}, {pipeline_mode = #tpu.pipeline_mode<synchronous>, transform_indices = @transform_4, window_bounds = array<i64: 1, 64>}, {pipeline_mode = #tpu.pipeline_mode<synchronous>, transform_indices = @transform_5, window_bounds = array<i64: 64, 128>}, {pipeline_mode = #tpu.pipeline_mode<synchronous>, transform_indices = @transform_6, window_bounds = array<i64: 1, 128>}, {transform_indices = @transform_7, window_bounds = array<i64: 128, 128>}, {transform_indices = @transform_8, window_bounds = array<i64: 128, 128>}]} {
    %c0 = arith.constant 0 : index
    %c0_0 = arith.constant 0 : index
    %0 = vector.load %arg1[%c0, %c0_0] : memref<128x32xf32, #tpu.memory_space<vmem>>, vector<128x32xf32>
    %c0_1 = arith.constant 0 : index
    %c0_2 = arith.constant 0 : index
    %1 = vector.load %arg2[%c0_1, %c0_2] : memref<32x64xf32, #tpu.memory_space<vmem>>, vector<32x64xf32>
    %c0_3 = arith.constant 0 : index
    %c0_4 = arith.constant 0 : index
    %2 = vector.load %arg3[%c0_3, %c0_4] : memref<1x64xf32, #tpu.memory_space<vmem>>, vector<1x64xf32>
    %cst = arith.constant dense<0.000000e+00> : vector<128x64xf32>
    %3 = tpu.matmul %0, %1, %cst {dimension_numbers = #tpu.dot_dimension_numbers<[1], [0], [0], [1], [0, 0, 1, 1], [], []>} : vector<128x32xf32>, vector<32x64xf32>, vector<128x64xf32> -> vector<128x64xf32>
    %4 = vector.broadcast %2 : vector<1x64xf32> to vector<128x64xf32>
    %5 = arith.addf %3, %4 : vector<128x64xf32>
    %cst_5 = arith.constant 0.000000e+00 : f32
    %6 = vector.broadcast %cst_5 : f32 to vector<128x64xf32>
    %7 = arith.maximumf %5, %6 : vector<128x64xf32>
    %c0_6 = arith.constant 0 : index
    %c0_7 = arith.constant 0 : index
    %8 = vector.load %arg4[%c0_6, %c0_7] : memref<64x64xf32, #tpu.memory_space<vmem>>, vector<64x64xf32>
    %c0_8 = arith.constant 0 : index
    %c0_9 = arith.constant 0 : index
    %9 = vector.load %arg5[%c0_8, %c0_9] : memref<1x64xf32, #tpu.memory_space<vmem>>, vector<1x64xf32>
    %cst_10 = arith.constant dense<0.000000e+00> : vector<128x64xf32>
    %10 = tpu.matmul %7, %8, %cst_10 {dimension_numbers = #tpu.dot_dimension_numbers<[1], [0], [0], [1], [0, 0, 1, 1], [], []>} : vector<128x64xf32>, vector<64x64xf32>, vector<128x64xf32> -> vector<128x64xf32>
    %11 = vector.broadcast %9 : vector<1x64xf32> to vector<128x64xf32>
    %12 = arith.addf %10, %11 : vector<128x64xf32>
    %cst_11 = arith.constant 0.000000e+00 : f32
    %13 = vector.broadcast %cst_11 : f32 to vector<128x64xf32>
    %14 = arith.maximumf %12, %13 : vector<128x64xf32>
    %c0_12 = arith.constant 0 : index
    %c0_13 = arith.constant 0 : index
    %15 = vector.load %arg6[%c0_12, %c0_13] : memref<64x128xf32, #tpu.memory_space<vmem>>, vector<64x128xf32>
    %c0_14 = arith.constant 0 : index
    %c0_15 = arith.constant 0 : index
    %16 = vector.load %arg7[%c0_14, %c0_15] : memref<1x128xf32, #tpu.memory_space<vmem>>, vector<1x128xf32>
    %cst_16 = arith.constant dense<0.000000e+00> : vector<128x128xf32>
    %17 = tpu.matmul %14, %15, %cst_16 {dimension_numbers = #tpu.dot_dimension_numbers<[1], [0], [0], [1], [0, 0, 1, 1], [], []>} : vector<128x64xf32>, vector<64x128xf32>, vector<128x128xf32> -> vector<128x128xf32>
    %18 = vector.broadcast %16 : vector<1x128xf32> to vector<128x128xf32>
    %19 = arith.addf %17, %18 : vector<128x128xf32>
    %c0_17 = arith.constant 0 : index
    %c0_18 = arith.constant 0 : index
    %20 = vector.load %arg8[%c0_17, %c0_18] : memref<128x128xf32, #tpu.memory_space<vmem>>, vector<128x128xf32>
    tpu.vector_store %arg8[%c0_17, %c0_18], %19 {strides = array<i32>} : memref<128x128xf32, #tpu.memory_space<vmem>>, vector<128x128xf32>,
    %21 = tpu.iota {dimensions = array<i32: 1>} : vector<128x128xi32>
    %c16_i32 = arith.constant 16 : i32
    %22 = vector.broadcast %c16_i32 : i32 to vector<128x128xi32>
    %23 = arith.cmpi slt, %21, %22 : vector<128x128xi32>
    %cst_19 = arith.constant -1.000000e+30 : f32
    %24 = vector.broadcast %cst_19 : f32 to vector<128x128xf32>
    %25 = arith.select %23, %19, %24 : vector<128x128xi1>, vector<128x128xf32>
    %cst_20 = arith.constant dense<0xFF800000> : vector<128xf32>
    %26 = vector.multi_reduction <maximumf>, %25, %cst_20 [1] : vector<128x128xf32> to vector<128xf32>
    %27 = vector.shape_cast %26 : vector<128xf32> to vector<128x1xf32>
    %28 = vector.broadcast %27 : vector<128x1xf32> to vector<128x128xf32>
    %29 = arith.subf %19, %28 : vector<128x128xf32>
    %30 = math.exp %29 : vector<128x128xf32>
    %cst_21 = arith.constant 0.000000e+00 : f32
    %31 = vector.broadcast %cst_21 : f32 to vector<128x128xf32>
    %32 = arith.select %23, %30, %31 : vector<128x128xi1>, vector<128x128xf32>
    %cst_22 = arith.constant dense<0.000000e+00> : vector<128xf32>
    %33 = vector.multi_reduction <add>, %32, %cst_22 [1] : vector<128x128xf32> to vector<128xf32>
    %34 = vector.shape_cast %33 : vector<128xf32> to vector<128x1xf32>
    %35 = vector.broadcast %34 : vector<128x1xf32> to vector<128x128xf32>
    %36 = arith.divf %32, %35 : vector<128x128xf32>
    %c0_23 = arith.constant 0 : index
    %c0_24 = arith.constant 0 : index
    %37 = vector.load %arg9[%c0_23, %c0_24] : memref<128x128xf32, #tpu.memory_space<vmem>>, vector<128x128xf32>
    tpu.vector_store %arg9[%c0_23, %c0_24], %36 {strides = array<i32>} : memref<128x128xf32, #tpu.memory_space<vmem>>, vector<128x128xf32>,
    return
  }
  func.func @transform_0(%arg0: i32) -> (i32, i32) {
    %c0_i32 = arith.constant 0 : i32
    %c0_i32_0 = arith.constant 0 : i32
    return %arg0, %c0_i32 : i32, i32
  }
  func.func @transform_1(%arg0: i32) -> (i32, i32) {
    %c0_i32 = arith.constant 0 : i32
    %c0_i32_0 = arith.constant 0 : i32
    %c0_i32_1 = arith.constant 0 : i32
    return %c0_i32, %c0_i32_0 : i32, i32
  }
  func.func @transform_2(%arg0: i32) -> (i32, i32) {
    %c0_i32 = arith.constant 0 : i32
    %c0_i32_0 = arith.constant 0 : i32
    %c0_i32_1 = arith.constant 0 : i32
    return %c0_i32, %c0_i32_0 : i32, i32
  }
  func.func @transform_3(%arg0: i32) -> (i32, i32) {
    %c0_i32 = arith.constant 0 : i32
    %c0_i32_0 = arith.constant 0 : i32
    %c0_i32_1 = arith.constant 0 : i32
    return %c0_i32, %c0_i32_0 : i32, i32
  }
  func.func @transform_4(%arg0: i32) -> (i32, i32) {
    %c0_i32 = arith.constant 0 : i32
    %c0_i32_0 = arith.constant 0 : i32
    %c0_i32_1 = arith.constant 0 : i32
    return %c0_i32, %c0_i32_0 : i32, i32
  }
  func.func @transform_5(%arg0: i32) -> (i32, i32) {
    %c0_i32 = arith.constant 0 : i32
    %c0_i32_0 = arith.constant 0 : i32
    %c0_i32_1 = arith.constant 0 : i32
    return %c0_i32, %c0_i32_0 : i32, i32
  }
  func.func @transform_6(%arg0: i32) -> (i32, i32) {
    %c0_i32 = arith.constant 0 : i32
    %c0_i32_0 = arith.constant 0 : i32
    %c0_i32_1 = arith.constant 0 : i32
    return %c0_i32, %c0_i32_0 : i32, i32
  }
  func.func @transform_7(%arg0: i32) -> (i32, i32) {
    %c0_i32 = arith.constant 0 : i32
    %c0_i32_0 = arith.constant 0 : i32
    return %arg0, %c0_i32 : i32, i32
  }
  func.func @transform_8(%arg0: i32) -> (i32, i32) {
    %c0_i32 = arith.constant 0 : i32
    %c0_i32_0 = arith.constant 0 : i32
    return %arg0, %c0_i32 : i32, i32
  }
}

</mosaic_0001>

<llo_original>
// kernel: tpu_custom_call.1
$region0: #{tpu_custom_call.1}
  #allocation0 [shape = 'u32[]', space=smem, size = 0x4, offset = 0x4, fixed_abs, tag = 'smem constant byte address 0x4 - core index']
  #allocation1 [shape = 'u32[144,128]{1,0:T(1,128)}', space=vmem, size = 0x12000, scoped, tag = 'internal scratch']
  %s0 = inlined_call_operand.vmem [shape: f32[128,32], index: 0, kind: input, shape index: {}]
  %s1 = inlined_call_operand.vmem [shape: f32[32,64], index: 1, kind: input, shape index: {}]
  %s2 = inlined_call_operand.vmem [shape: f32[1,64], index: 2, kind: input, shape index: {}]
  %s3 = inlined_call_operand.vmem [shape: f32[64,64], index: 3, kind: input, shape index: {}]
  %s4 = inlined_call_operand.vmem [shape: f32[1,64], index: 4, kind: input, shape index: {}]
  %s5 = inlined_call_operand.vmem [shape: f32[64,128], index: 5, kind: input, shape index: {}]
  %s6 = inlined_call_operand.vmem [shape: f32[1,128], index: 6, kind: input, shape index: {}]
  %s7 = inlined_call_operand.hbm [shape: f32[128,128], index: 7, kind: output, shape index: {0}]
  %s8 = inlined_call_operand.hbm [shape: f32[128,128], index: 8, kind: output, shape index: {1}]
  %9 = xla_tuple %s7, %s8
  %s10 = sld [smem:[#allocation0]]
  $region46: #{tpu_custom_call.1} parent=0
    _
  %s12 = ssub.s32 1, %s10
  %s13 = scalar_select 0, %s12, %s10
  $region1: #{tpu_custom_call.1} parent=0
    #allocation2 [shape = 'u8[65536]{0}', space=vmem, size = 0x10000, scoped, tag = 'output window, operand 0, single buffered']
    #allocation3 [shape = 's32[1]{0}', space=sflag, size = 0x4, scoped, tag = 'scoped memory for tpu_custom_call.1']
    #allocation4 [shape = 'u8[65536]{0}', space=vmem, size = 0x10000, scoped, tag = 'output window, operand 1, single buffered']
    #allocation5 [shape = 's32[1]{0}', space=sflag, size = 0x4, scoped, tag = 'scoped memory for tpu_custom_call.1']
    %14 = vsyncpa [#allocation3], 0
    %15 = vsyncpa [#allocation5], 0
    // Predicated region
    $region2: #{tpu_custom_call.1} parent=1 // pred_check
      _
    $region3: #{tpu_custom_call.1} parent=1 // pred_check_branch
      %17 = sbr.rel (0) target = $region5
    $region4: #{tpu_custom_call.1} parent=1 // pred_region
      _
    $region5: #{tpu_custom_call.1} parent=1 // pred_fallthru
      _
    // Predicated region
    $region6: #{tpu_custom_call.1} parent=1 // pred_check
      _
    $region7: #{tpu_custom_call.1} parent=1 // pred_check_branch
      %19 = sbr.rel (0) target = $region9
    $region8: #{tpu_custom_call.1} parent=1 // pred_region
      _
    $region9: #{tpu_custom_call.1} parent=1 // pred_fallthru
      _
    // Predicated region
    $region10: #{tpu_custom_call.1} parent=1 // pred_check
      _
    $region11: #{tpu_custom_call.1} parent=1 // pred_check_branch
      %21 = sbr.rel (0) target = $region13
    $region12: #{tpu_custom_call.1} parent=1 // pred_region
      _
    $region13: #{tpu_custom_call.1} parent=1 // pred_fallthru
      _
    // Predicated region
    $region14: #{tpu_custom_call.1} parent=1 // pred_check
      _
    $region15: #{tpu_custom_call.1} parent=1 // pred_check_branch
      %23 = sbr.rel (0) target = $region17
    $region16: #{tpu_custom_call.1} parent=1 // pred_region
      _
    $region17: #{tpu_custom_call.1} parent=1 // pred_fallthru
      _
    // Predicated region
    $region18: #{tpu_custom_call.1} parent=1 // pred_check
      _
    $region19: #{tpu_custom_call.1} parent=1 // pred_check_branch
      %25 = sbr.rel (0) target = $region21
    $region20: #{tpu_custom_call.1} parent=1 // pred_region
      _
    $region21: #{tpu_custom_call.1} parent=1 // pred_fallthru
      _
    // Predicated region
    $region22: #{tpu_custom_call.1} parent=1 // pred_check
      _
    $region23: #{tpu_custom_call.1} parent=1 // pred_check_branch
      %27 = sbr.rel (0) target = $region25
    $region24: #{tpu_custom_call.1} parent=1 // pred_region
      _
    $region25: #{tpu_custom_call.1} parent=1 // pred_fallthru
      _
    // Predicated region
    $region26: #{tpu_custom_call.1} parent=1 // pred_check
      _
    $region27: #{tpu_custom_call.1} parent=1 // pred_check_branch
      %29 = sbr.rel (0) target = $region29
    $region28: #{tpu_custom_call.1} parent=1 // pred_region
      _
    $region29: #{tpu_custom_call.1} parent=1 // pred_fallthru
      _
    %v30 = vld [vmem:[%s0] sm:$0xff]
    %v31 = vld [vmem:[%s0 + $0x8] sm:$0xff]
    %v32 = vld [vmem:[%s0 + $0x10] sm:$0xff]
    %v33 = vld [vmem:[%s0 + $0x18] sm:$0xff]
    %v34 = vld [vmem:[%s0 + $0x20] sm:$0xff]
    %v35 = vld [vmem:[%s0 + $0x28] sm:$0xff]
    %v36 = vld [vmem:[%s0 + $0x30] sm:$0xff]
    %v37 = vld [vmem:[%s0 + $0x38] sm:$0xff]
    %v38 = vld [vmem:[%s0 + $0x40] sm:$0xff]
    %v39 = vld [vmem:[%s0 + $0x48] sm:$0xff]
    %v40 = vld [vmem:[%s0 + $0x50] sm:$0xff]
    %v41 = vld [vmem:[%s0 + $0x58] sm:$0xff]
    %v42 = vld [vmem:[%s0 + $0x60] sm:$0xff]
    %v43 = vld [vmem:[%s0 + $0x68] sm:$0xff]
    %v44 = vld [vmem:[%s0 + $0x70] sm:$0xff]
    %v45 = vld [vmem:[%s0 + $0x78] sm:$0xff]
    %v46 = vld [vmem:[%s1] sm:$0xff]
    %v47 = vld [vmem:[%s1 + $0x8] sm:$0xff]
    %v48 = vld [vmem:[%s1 + $0x10] sm:$0xff]
    %v49 = vld [vmem:[%s1 + $0x18] sm:$0xff]
    %v50 = vld [vmem:[%s2] sm:$0x1]
    %v52 = vlaneseq
    %v53 = vshrl.u32 %v52, 7
    %v54 = vsub.s32 0, %v53
    %v55 = vrot.slane %v50, %v54
    %vm57 = vcmask 261120
    %v59 = vsel %vm57, %v30, 0
    %v62 = vsel %vm57, %v31, 0
    %v65 = vsel %vm57, %v32, 0
    %v68 = vsel %vm57, %v33, 0
    %v71 = vsel %vm57, %v34, 0
    %v74 = vsel %vm57, %v35, 0
    %v77 = vsel %vm57, %v36, 0
    %v80 = vsel %vm57, %v37, 0
    %v83 = vsel %vm57, %v38, 0
    %v86 = vsel %vm57, %v39, 0
    %v89 = vsel %vm57, %v40, 0
    %v92 = vsel %vm57, %v41, 0
    %v95 = vsel %vm57, %v42, 0
    %v98 = vsel %vm57, %v43, 0
    %v101 = vsel %vm57, %v44, 0
    %v104 = vsel %vm57, %v45, 0
    %106 = vmatprep.subr.mxu0 0.0
    %107 = vmatpush1.msra.mxu0 %v46
    %108 = vmatprep.subr.mxu0 0.0
    %109 = vmatpush1.msra.mxu0 %v47
    %110 = vmatprep.subr.mxu0 0.0
    %111 = vmatpush1.msra.mxu0 %v48
    %112 = vmatprep.subr.mxu0 0.0
    %113 = vmatpush1.msra.mxu0 %v49
    %114 = vmatprep.subr.mxu0 0.0
    %115 = vmatpush1.msra.mxu0 0.0
    %116 = vmatprep.subr.mxu0 0.0
    %117 = vmatpush1.msra.mxu0 0.0
    %118 = vmatprep.subr.mxu0 0.0
    %119 = vmatpush1.msra.mxu0 0.0
    %120 = vmatprep.subr.mxu0 0.0
    %121 = vmatpush1.msra.mxu0 0.0
    %122 = vmatprep.subr.mxu0 0.0
    %123 = vmatpush1.msra.mxu0 0.0
    %124 = vmatprep.subr.mxu0 0.0
    %125 = vmatpush1.msra.mxu0 0.0
    %126 = vmatprep.subr.mxu0 0.0
    %127 = vmatpush1.msra.mxu0 0.0
    %128 = vmatprep.subr.mxu0 0.0
    %129 = vmatpush1.msra.mxu0 0.0
    %130 = vmatprep.subr.mxu0 0.0
    %131 = vmatpush1.msra.mxu0 0.0
    %132 = vmatprep.subr.mxu0 0.0
    %133 = vmatpush1.msra.mxu0 0.0
    %134 = vmatprep.subr.mxu0 0.0
    %135 = vmatpush1.msra.mxu0 0.0
    %136 = vmatprep.subr.mxu0 0.0
    %137 = vmatpush1.msra.mxu0 0.0
    %138 = vmatprep.subr.mxu0 0.0
    %139 = vmatpush1.msra.mxu0 0.0
    %140 = vmatprep.subr.mxu0 0.0
    %141 = vmatpush1.msra.mxu0 0.0
    %142 = vmatprep.subr.mxu0 0.0
    %143 = vmatpush1.msra.mxu0 0.0
    %144 = vmatprep.subr.mxu0 0.0
    %145 = vmatpush1.msra.mxu0 0.0
    %146 = vmatprep.subr.mxu0 0.0
    %147 = vmatpush1.msra.mxu0 0.0
    %148 = vmatprep.subr.mxu0 0.0
    %149 = vmatpush1.msra.mxu0 0.0
    %150 = vmatprep.subr.mxu0 0.0
    %151 = vmatpush1.msra.mxu0 0.0
    %152 = vmatprep.subr.mxu0 0.0
    %153 = vmatpush1.msra.mxu0 0.0
    %154 = vmatprep.subr.mxu0 0.0
    %155 = vmatpush1.msra.mxu0 0.0
    %156 = vmatprep.subr.mxu0 0.0
    %157 = vmatpush1.msra.mxu0 0.0
    %158 = vmatprep.subr.mxu0 0.0
    %159 = vmatpush1.msra.mxu0 0.0
    %160 = vmatprep.subr.mxu0 0.0
    %161 = vmatpush1.msra.mxu0 0.0
    %162 = vmatprep.subr.mxu0 0.0
    %163 = vmatpush1.msra.mxu0 0.0
    %164 = vmatprep.subr.mxu0 0.0
    %165 = vmatpush1.msra.mxu0 0.0
    %166 = vmatprep.subr.mxu0 0.0
    %167 = vmatpush1.msra.mxu0 0.0
    %168 = vmatprep.subr.mxu0 0.0
    %169 = vmatpush1.msra.mxu0 0.0
    %170 = vmatprep.mubr.f32.mxu0 0.0
    %171 = vmatmul.mubr.f32.gmra.mrb[0].mxu0 %v59
    %v172 = vpop.f32.mrb[0].mxu0
    %v173 = vadd.f32 %v55, %v172
    %v174 = vpop.f32.mrb[0].mxu0
    %175 = vmatprep.mubr.f32.mxu0 0.0
    %176 = vmatmul.mubr.f32.gmra.mrb[0].mxu0 %v62
    %v177 = vpop.f32.mrb[0].mxu0
    %v178 = vadd.f32 %v55, %v177
    %v179 = vpop.f32.mrb[0].mxu0
    %180 = vmatprep.mubr.f32.mxu0 0.0
    %181 = vmatmul.mubr.f32.gmra.mrb[0].mxu0 %v65
    %v182 = vpop.f32.mrb[0].mxu0
    %v183 = vadd.f32 %v55, %v182
    %v184 = vpop.f32.mrb[0].mxu0
    %185 = vmatprep.mubr.f32.mxu0 0.0
    %186 = vmatmul.mubr.f32.gmra.mrb[0].mxu0 %v68
    %v187 = vpop.f32.mrb[0].mxu0
    %v188 = vadd.f32 %v55, %v187
    %v189 = vpop.f32.mrb[0].mxu0
    %190 = vmatprep.mubr.f32.mxu0 0.0
    %191 = vmatmul.mubr.f32.gmra.mrb[0].mxu0 %v71
    %v192 = vpop.f32.mrb[0].mxu0
    %v193 = vadd.f32 %v55, %v192
    %v194 = vpop.f32.mrb[0].mxu0
    %195 = vmatprep.mubr.f32.mxu0 0.0
    %196 = vmatmul.mubr.f32.gmra.mrb[0].mxu0 %v74
    %v197 = vpop.f32.mrb[0].mxu0
    %v198 = vadd.f32 %v55, %v197
    %v199 = vpop.f32.mrb[0].mxu0
    %200 = vmatprep.mubr.f32.mxu0 0.0
    %201 = vmatmul.mubr.f32.gmra.mrb[0].mxu0 %v77
    %v202 = vpop.f32.mrb[0].mxu0
    %v203 = vadd.f32 %v55, %v202
    %v204 = vpop.f32.mrb[0].mxu0
    %205 = vmatprep.mubr.f32.mxu0 0.0
    %206 = vmatmul.mubr.f32.gmra.mrb[0].mxu0 %v80
    %v207 = vpop.f32.mrb[0].mxu0
    %v208 = vadd.f32 %v55, %v207
    %v209 = vpop.f32.mrb[0].mxu0
    %210 = vmatprep.mubr.f32.mxu0 0.0
    %211 = vmatmul.mubr.f32.gmra.mrb[0].mxu0 %v83
    %v212 = vpop.f32.mrb[0].mxu0
    %v213 = vadd.f32 %v55, %v212
    %v214 = vpop.f32.mrb[0].mxu0
    %215 = vmatprep.mubr.f32.mxu0 0.0
    %216 = vmatmul.mubr.f32.gmra.mrb[0].mxu0 %v86
    %v217 = vpop.f32.mrb[0].mxu0
    %v218 = vadd.f32 %v55, %v217
    %v219 = vpop.f32.mrb[0].mxu0
    %220 = vmatprep.mubr.f32.mxu0 0.0
    %221 = vmatmul.mubr.f32.gmra.mrb[0].mxu0 %v89
    %v222 = vpop.f32.mrb[0].mxu0
    %v223 = vadd.f32 %v55, %v222
    %v224 = vpop.f32.mrb[0].mxu0
    %225 = vmatprep.mubr.f32.mxu0 0.0
    %226 = vmatmul.mubr.f32.gmra.mrb[0].mxu0 %v92
    %v227 = vpop.f32.mrb[0].mxu0
    %v228 = vadd.f32 %v55, %v227
    %v229 = vpop.f32.mrb[0].mxu0
    %230 = vmatprep.mubr.f32.mxu0 0.0
    %231 = vmatmul.mubr.f32.gmra.mrb[0].mxu0 %v95
    %v232 = vpop.f32.mrb[0].mxu0
    %v233 = vadd.f32 %v55, %v232
    %v234 = vpop.f32.mrb[0].mxu0
    %235 = vmatprep.mubr.f32.mxu0 0.0
    %236 = vmatmul.mubr.f32.gmra.mrb[0].mxu0 %v98
    %v237 = vpop.f32.mrb[0].mxu0
    %v238 = vadd.f32 %v55, %v237
    %v239 = vpop.f32.mrb[0].mxu0
    %240 = vmatprep.mubr.f32.mxu0 0.0
    %241 = vmatmul.mubr.f32.gmra.mrb[0].mxu0 %v101
    %v242 = vpop.f32.mrb[0].mxu0
    %v243 = vadd.f32 %v55, %v242
    %v244 = vpop.f32.mrb[0].mxu0
    %245 = vmatprep.mubr.f32.mxu0 0.0
    %246 = vmatmul.mubr.f32.gmra.mrb[0].mxu0 %v104
    %v247 = vpop.f32.mrb[0].mxu0
    %v248 = vadd.f32 %v55, %v247
    %v249 = vpop.f32.mrb[0].mxu0
    %250 = vdwg.mxu0
    %v251 = vmax.f32 %v173, 0.0
    %v252 = vmax.f32 %v178, 0.0
    %v253 = vmax.f32 %v183, 0.0
    %v254 = vmax.f32 %v188, 0.0
    %v255 = vmax.f32 %v193, 0.0
    %v256 = vmax.f32 %v198, 0.0
    %v257 = vmax.f32 %v203, 0.0
    %v258 = vmax.f32 %v208, 0.0
    %v259 = vmax.f32 %v213, 0.0
    %v260 = vmax.f32 %v218, 0.0
    %v261 = vmax.f32 %v223, 0.0
    %v262 = vmax.f32 %v228, 0.0
    %v263 = vmax.f32 %v233, 0.0
    %v264 = vmax.f32 %v238, 0.0
    %v265 = vmax.f32 %v243, 0.0
    %v266 = vmax.f32 %v248, 0.0
    %v267 = vld [vmem:[%s3] sm:$0xff]
    %v268 = vld [vmem:[%s3 + $0x8] sm:$0xff]
    %v269 = vld [vmem:[%s3 + $0x10] sm:$0xff]
    %v270 = vld [vmem:[%s3 + $0x18] sm:$0xff]
    %v271 = vld [vmem:[%s3 + $0x20] sm:$0xff]
    %v272 = vld [vmem:[%s3 + $0x28] sm:$0xff]
    %v273 = vld [vmem:[%s3 + $0x30] sm:$0xff]
    %v274 = vld [vmem:[%s3 + $0x38] sm:$0xff]
    %v275 = vld [vmem:[%s4] sm:$0x1]
    %v277 = vlaneseq
    %v278 = vshrl.u32 %v277, 7
    %v279 = vsub.s32 0, %v278
    %v280 = vrot.slane %v275, %v279
    %vm282 = vcmask 523264
    %v284 = vsel %vm282, %v251, 0
    %v287 = vsel %vm282, %v252, 0
    %v290 = vsel %vm282, %v253, 0
    %v293 = vsel %vm282, %v254, 0
    %v296 = vsel %vm282, %v255, 0
    %v299 = vsel %vm282, %v256, 0
    %v302 = vsel %vm282, %v257, 0
    %v305 = vsel %vm282, %v258, 0
    %v308 = vsel %vm282, %v259, 0
    %v311 = vsel %vm282, %v260, 0
    %v314 = vsel %vm282, %v261, 0
    %v317 = vsel %vm282, %v262, 0
    %v320 = vsel %vm282, %v263, 0
    %v323 = vsel %vm282, %v264, 0
    %v326 = vsel %vm282, %v265, 0
    %v329 = vsel %vm282, %v266, 0
    %331 = vmatprep.subr.mxu0 0.0
    %332 = vmatpush1.msra.mxu0 %v267
    %333 = vmatprep.subr.mxu0 0.0
    %334 = vmatpush1.msra.mxu0 %v268
    %335 = vmatprep.subr.mxu0 0.0
    %336 = vmatpush1.msra.mxu0 %v269
    %337 = vmatprep.subr.mxu0 0.0
    %338 = vmatpush1.msra.mxu0 %v270
    %339 = vmatprep.subr.mxu0 0.0
    %340 = vmatpush1.msra.mxu0 %v271
    %341 = vmatprep.subr.mxu0 0.0
    %342 = vmatpush1.msra.mxu0 %v272
    %343 = vmatprep.subr.mxu0 0.0
    %344 = vmatpush1.msra.mxu0 %v273
    %345 = vmatprep.subr.mxu0 0.0
    %346 = vmatpush1.msra.mxu0 %v274
    %347 = vmatprep.subr.mxu0 0.0
    %348 = vmatpush1.msra.mxu0 0.0
    %349 = vmatprep.subr.mxu0 0.0
    %350 = vmatpush1.msra.mxu0 0.0
    %351 = vmatprep.subr.mxu0 0.0
    %352 = vmatpush1.msra.mxu0 0.0
    %353 = vmatprep.subr.mxu0 0.0
    %354 = vmatpush1.msra.mxu0 0.0
    %355 = vmatprep.subr.mxu0 0.0
    %356 = vmatpush1.msra.mxu0 0.0
    %357 = vmatprep.subr.mxu0 0.0
    %358 = vmatpush1.msra.mxu0 0.0
    %359 = vmatprep.subr.mxu0 0.0
    %360 = vmatpush1.msra.mxu0 0.0
    %361 = vmatprep.subr.mxu0 0.0
    %362 = vmatpush1.msra.mxu0 0.0
    %363 = vmatprep.subr.mxu0 0.0
    %364 = vmatpush1.msra.mxu0 0.0
    %365 = vmatprep.subr.mxu0 0.0
    %366 = vmatpush1.msra.mxu0 0.0
    %367 = vmatprep.subr.mxu0 0.0
    %368 = vmatpush1.msra.mxu0 0.0
    %369 = vmatprep.subr.mxu0 0.0
    %370 = vmatpush1.msra.mxu0 0.0
    %371 = vmatprep.subr.mxu0 0.0
    %372 = vmatpush1.msra.mxu0 0.0
    %373 = vmatprep.subr.mxu0 0.0
    %374 = vmatpush1.msra.mxu0 0.0
    %375 = vmatprep.subr.mxu0 0.0
    %376 = vmatpush1.msra.mxu0 0.0
    %377 = vmatprep.subr.mxu0 0.0
    %378 = vmatpush1.msra.mxu0 0.0
    %379 = vmatprep.subr.mxu0 0.0
    %380 = vmatpush1.msra.mxu0 0.0
    %381 = vmatprep.subr.mxu0 0.0
    %382 = vmatpush1.msra.mxu0 0.0
    %383 = vmatprep.subr.mxu0 0.0
    %384 = vmatpush1.msra.mxu0 0.0
    %385 = vmatprep.subr.mxu0 0.0
    %386 = vmatpush1.msra.mxu0 0.0
    %387 = vmatprep.subr.mxu0 0.0
    %388 = vmatpush1.msra.mxu0 0.0
    %389 = vmatprep.subr.mxu0 0.0
    %390 = vmatpush1.msra.mxu0 0.0
    %391 = vmatprep.subr.mxu0 0.0
    %392 = vmatpush1.msra.mxu0 0.0
    %393 = vmatprep.subr.mxu0 0.0
    %394 = vmatpush1.msra.mxu0 0.0
    %395 = vmatprep.mubr.f32.mxu0 0.0
    %396 = vmatmul.mubr.f32.gmra.mrb[0].mxu0 %v284
    %v397 = vpop.f32.mrb[0].mxu0
    %v398 = vadd.f32 %v280, %v397
    %v399 = vpop.f32.mrb[0].mxu0
    %400 = vmatprep.mubr.f32.mxu0 0.0
    %401 = vmatmul.mubr.f32.gmra.mrb[0].mxu0 %v287
    %v402 = vpop.f32.mrb[0].mxu0
    %v403 = vadd.f32 %v280, %v402
    %v404 = vpop.f32.mrb[0].mxu0
    %405 = vmatprep.mubr.f32.mxu0 0.0
    %406 = vmatmul.mubr.f32.gmra.mrb[0].mxu0 %v290
    %v407 = vpop.f32.mrb[0].mxu0
    %v408 = vadd.f32 %v280, %v407
    %v409 = vpop.f32.mrb[0].mxu0
    %410 = vmatprep.mubr.f32.mxu0 0.0
    %411 = vmatmul.mubr.f32.gmra.mrb[0].mxu0 %v293
    %v412 = vpop.f32.mrb[0].mxu0
    %v413 = vadd.f32 %v280, %v412
    %v414 = vpop.f32.mrb[0].mxu0
    %415 = vmatprep.mubr.f32.mxu0 0.0
    %416 = vmatmul.mubr.f32.gmra.mrb[0].mxu0 %v296
    %v417 = vpop.f32.mrb[0].mxu0
    %v418 = vadd.f32 %v280, %v417
    %v419 = vpop.f32.mrb[0].mxu0
    %420 = vmatprep.mubr.f32.mxu0 0.0
    %421 = vmatmul.mubr.f32.gmra.mrb[0].mxu0 %v299
    %v422 = vpop.f32.mrb[0].mxu0
    %v423 = vadd.f32 %v280, %v422
    %v424 = vpop.f32.mrb[0].mxu0
    %425 = vmatprep.mubr.f32.mxu0 0.0
    %426 = vmatmul.mubr.f32.gmra.mrb[0].mxu0 %v302
    %v427 = vpop.f32.mrb[0].mxu0
    %v428 = vadd.f32 %v280, %v427
    %v429 = vpop.f32.mrb[0].mxu0
    %430 = vmatprep.mubr.f32.mxu0 0.0
    %431 = vmatmul.mubr.f32.gmra.mrb[0].mxu0 %v305
    %v432 = vpop.f32.mrb[0].mxu0
    %v433 = vadd.f32 %v280, %v432
    %v434 = vpop.f32.mrb[0].mxu0
    %435 = vmatprep.mubr.f32.mxu0 0.0
    %436 = vmatmul.mubr.f32.gmra.mrb[0].mxu0 %v308
    %v437 = vpop.f32.mrb[0].mxu0
    %v438 = vadd.f32 %v280, %v437
    %v439 = vpop.f32.mrb[0].mxu0
    %440 = vmatprep.mubr.f32.mxu0 0.0
    %441 = vmatmul.mubr.f32.gmra.mrb[0].mxu0 %v311
    %v442 = vpop.f32.mrb[0].mxu0
    %v443 = vadd.f32 %v280, %v442
    %v444 = vpop.f32.mrb[0].mxu0
    %445 = vmatprep.mubr.f32.mxu0 0.0
    %446 = vmatmul.mubr.f32.gmra.mrb[0].mxu0 %v314
    %v447 = vpop.f32.mrb[0].mxu0
    %v448 = vadd.f32 %v280, %v447
    %v449 = vpop.f32.mrb[0].mxu0
    %450 = vmatprep.mubr.f32.mxu0 0.0
    %451 = vmatmul.mubr.f32.gmra.mrb[0].mxu0 %v317
    %v452 = vpop.f32.mrb[0].mxu0
    %v453 = vadd.f32 %v280, %v452
    %v454 = vpop.f32.mrb[0].mxu0
    %455 = vmatprep.mubr.f32.mxu0 0.0
    %456 = vmatmul.mubr.f32.gmra.mrb[0].mxu0 %v320
    %v457 = vpop.f32.mrb[0].mxu0
    %v458 = vadd.f32 %v280, %v457
    %v459 = vpop.f32.mrb[0].mxu0
    %460 = vmatprep.mubr.f32.mxu0 0.0
    %461 = vmatmul.mubr.f32.gmra.mrb[0].mxu0 %v323
    %v462 = vpop.f32.mrb[0].mxu0
    %v463 = vadd.f32 %v280, %v462
    %v464 = vpop.f32.mrb[0].mxu0
    %465 = vmatprep.mubr.f32.mxu0 0.0
    %466 = vmatmul.mubr.f32.gmra.mrb[0].mxu0 %v326
    %v467 = vpop.f32.mrb[0].mxu0
    %v468 = vadd.f32 %v280, %v467
    %v469 = vpop.f32.mrb[0].mxu0
    %470 = vmatprep.mubr.f32.mxu0 0.0
    %471 = vmatmul.mubr.f32.gmra.mrb[0].mxu0 %v329
    %v472 = vpop.f32.mrb[0].mxu0
    %v473 = vadd.f32 %v280, %v472
    %v474 = vpop.f32.mrb[0].mxu0
    %475 = vdwg.mxu0
    %v476 = vmax.f32 %v398, 0.0
    %v477 = vmax.f32 %v403, 0.0
    %v478 = vmax.f32 %v408, 0.0
    %v479 = vmax.f32 %v413, 0.0
    %v480 = vmax.f32 %v418, 0.0
    %v481 = vmax.f32 %v423, 0.0
    %v482 = vmax.f32 %v428, 0.0
    %v483 = vmax.f32 %v433, 0.0
    %v484 = vmax.f32 %v438, 0.0
    %v485 = vmax.f32 %v443, 0.0
    %v486 = vmax.f32 %v448, 0.0
    %v487 = vmax.f32 %v453, 0.0
    %v488 = vmax.f32 %v458, 0.0
    %v489 = vmax.f32 %v463, 0.0
    %v490 = vmax.f32 %v468, 0.0
    %v491 = vmax.f32 %v473, 0.0
    %v492 = vld [vmem:[%s5] sm:$0xff]
    %v493 = vld [vmem:[%s5 + $0x8] sm:$0xff]
    %v494 = vld [vmem:[%s5 + $0x10] sm:$0xff]
    %v495 = vld [vmem:[%s5 + $0x18] sm:$0xff]
    %v496 = vld [vmem:[%s5 + $0x20] sm:$0xff]
    %v497 = vld [vmem:[%s5 + $0x28] sm:$0xff]
    %v498 = vld [vmem:[%s5 + $0x30] sm:$0xff]
    %v499 = vld [vmem:[%s5 + $0x38] sm:$0xff]
    %v500 = vld [vmem:[%s6] sm:$0x1]
    %v502 = vlaneseq
    %v503 = vshrl.u32 %v502, 7
    %v504 = vsub.s32 0, %v503
    %v505 = vrot.slane %v500, %v504
    %v508 = vsel %vm282, %v476, 0
    %v511 = vsel %vm282, %v477, 0
    %v514 = vsel %vm282, %v478, 0
    %v517 = vsel %vm282, %v479, 0
    %v520 = vsel %vm282, %v480, 0
    %v523 = vsel %vm282, %v481, 0
    %v526 = vsel %vm282, %v482, 0
    %v529 = vsel %vm282, %v483, 0
    %v532 = vsel %vm282, %v484, 0
    %v535 = vsel %vm282, %v485, 0
    %v538 = vsel %vm282, %v486, 0
    %v541 = vsel %vm282, %v487, 0
    %v544 = vsel %vm282, %v488, 0
    %v547 = vsel %vm282, %v489, 0
    %v550 = vsel %vm282, %v490, 0
    %v553 = vsel %vm282, %v491, 0
    %555 = vmatprep.subr.mxu0 0.0
    %556 = vmatpush1.msra.mxu0 %v492
    %557 = vmatprep.subr.mxu0 0.0
    %558 = vmatpush1.msra.mxu0 %v493
    %559 = vmatprep.subr.mxu0 0.0
    %560 = vmatpush1.msra.mxu0 %v494
    %561 = vmatprep.subr.mxu0 0.0
    %562 = vmatpush1.msra.mxu0 %v495
    %563 = vmatprep.subr.mxu0 0.0
    %564 = vmatpush1.msra.mxu0 %v496
    %565 = vmatprep.subr.mxu0 0.0
    %566 = vmatpush1.msra.mxu0 %v497
    %567 = vmatprep.subr.mxu0 0.0
    %568 = vmatpush1.msra.mxu0 %v498
    %569 = vmatprep.subr.mxu0 0.0
    %570 = vmatpush1.msra.mxu0 %v499
    %571 = vmatprep.subr.mxu0 0.0
    %572 = vmatpush1.msra.mxu0 0.0
    %573 = vmatprep.subr.mxu0 0.0
    %574 = vmatpush1.msra.mxu0 0.0
    %575 = vmatprep.subr.mxu0 0.0
    %576 = vmatpush1.msra.mxu0 0.0
    %577 = vmatprep.subr.mxu0 0.0
    %578 = vmatpush1.msra.mxu0 0.0
    %579 = vmatprep.subr.mxu0 0.0
    %580 = vmatpush1.msra.mxu0 0.0
    %581 = vmatprep.subr.mxu0 0.0
    %582 = vmatpush1.msra.mxu0 0.0
    %583 = vmatprep.subr.mxu0 0.0
    %584 = vmatpush1.msra.mxu0 0.0
    %585 = vmatprep.subr.mxu0 0.0
    %586 = vmatpush1.msra.mxu0 0.0
    %587 = vmatprep.subr.mxu0 0.0
    %588 = vmatpush1.msra.mxu0 0.0
    %589 = vmatprep.subr.mxu0 0.0
    %590 = vmatpush1.msra.mxu0 0.0
    %591 = vmatprep.subr.mxu0 0.0
    %592 = vmatpush1.msra.mxu0 0.0
    %593 = vmatprep.subr.mxu0 0.0
    %594 = vmatpush1.msra.mxu0 0.0
    %595 = vmatprep.subr.mxu0 0.0
    %596 = vmatpush1.msra.mxu0 0.0
    %597 = vmatprep.subr.mxu0 0.0
    %598 = vmatpush1.msra.mxu0 0.0
    %599 = vmatprep.subr.mxu0 0.0
    %600 = vmatpush1.msra.mxu0 0.0
    %601 = vmatprep.subr.mxu0 0.0
    %602 = vmatpush1.msra.mxu0 0.0
    %603 = vmatprep.subr.mxu0 0.0
    %604 = vmatpush1.msra.mxu0 0.0
    %605 = vmatprep.subr.mxu0 0.0
    %606 = vmatpush1.msra.mxu0 0.0
    %607 = vmatprep.subr.mxu0 0.0
    %608 = vmatpush1.msra.mxu0 0.0
    %609 = vmatprep.subr.mxu0 0.0
    %610 = vmatpush1.msra.mxu0 0.0
    %611 = vmatprep.subr.mxu0 0.0
    %612 = vmatpush1.msra.mxu0 0.0
    %613 = vmatprep.subr.mxu0 0.0
    %614 = vmatpush1.msra.mxu0 0.0
    %615 = vmatprep.subr.mxu0 0.0
    %616 = vmatpush1.msra.mxu0 0.0
    %617 = vmatprep.subr.mxu0 0.0
    %618 = vmatpush1.msra.mxu0 0.0
    %619 = vmatprep.mubr.f32.mxu0 0.0
    %620 = vmatmul.mubr.f32.gmra.mrb[0].mxu0 %v508
    %v621 = vpop.f32.mrb[0].mxu0
    %v622 = vadd.f32 %v505, %v621
    %v623 = vpop.f32.mrb[0].mxu0
    %624 = vmatprep.mubr.f32.mxu0 0.0
    %625 = vmatmul.mubr.f32.gmra.mrb[0].mxu0 %v511
    %v626 = vpop.f32.mrb[0].mxu0
    %v627 = vadd.f32 %v505, %v626
    %v628 = vpop.f32.mrb[0].mxu0
    %629 = vmatprep.mubr.f32.mxu0 0.0
    %630 = vmatmul.mubr.f32.gmra.mrb[0].mxu0 %v514
    %v631 = vpop.f32.mrb[0].mxu0
    %v632 = vadd.f32 %v505, %v631
    %v633 = vpop.f32.mrb[0].mxu0
    %634 = vmatprep.mubr.f32.mxu0 0.0
    %635 = vmatmul.mubr.f32.gmra.mrb[0].mxu0 %v517
    %v636 = vpop.f32.mrb[0].mxu0
    %v637 = vadd.f32 %v505, %v636
    %v638 = vpop.f32.mrb[0].mxu0
    %639 = vmatprep.mubr.f32.mxu0 0.0
    %640 = vmatmul.mubr.f32.gmra.mrb[0].mxu0 %v520
    %v641 = vpop.f32.mrb[0].mxu0
    %v642 = vadd.f32 %v505, %v641
    %v643 = vpop.f32.mrb[0].mxu0
    %644 = vmatprep.mubr.f32.mxu0 0.0
    %645 = vmatmul.mubr.f32.gmra.mrb[0].mxu0 %v523
    %v646 = vpop.f32.mrb[0].mxu0
    %v647 = vadd.f32 %v505, %v646
    %v648 = vpop.f32.mrb[0].mxu0
    %649 = vmatprep.mubr.f32.mxu0 0.0
    %650 = vmatmul.mubr.f32.gmra.mrb[0].mxu0 %v526
    %v651 = vpop.f32.mrb[0].mxu0
    %v652 = vadd.f32 %v505, %v651
    %v653 = vpop.f32.mrb[0].mxu0
    %654 = vmatprep.mubr.f32.mxu0 0.0
    %655 = vmatmul.mubr.f32.gmra.mrb[0].mxu0 %v529
    %v656 = vpop.f32.mrb[0].mxu0
    %v657 = vadd.f32 %v505, %v656
    %v658 = vpop.f32.mrb[0].mxu0
    %659 = vmatprep.mubr.f32.mxu0 0.0
    %660 = vmatmul.mubr.f32.gmra.mrb[0].mxu0 %v532
    %v661 = vpop.f32.mrb[0].mxu0
    %v662 = vadd.f32 %v505, %v661
    %v663 = vpop.f32.mrb[0].mxu0
    %664 = vmatprep.mubr.f32.mxu0 0.0
    %665 = vmatmul.mubr.f32.gmra.mrb[0].mxu0 %v535
    %v666 = vpop.f32.mrb[0].mxu0
    %v667 = vadd.f32 %v505, %v666
    %v668 = vpop.f32.mrb[0].mxu0
    %669 = vmatprep.mubr.f32.mxu0 0.0
    %670 = vmatmul.mubr.f32.gmra.mrb[0].mxu0 %v538
    %v671 = vpop.f32.mrb[0].mxu0
    %v672 = vadd.f32 %v505, %v671
    %v673 = vpop.f32.mrb[0].mxu0
    %674 = vmatprep.mubr.f32.mxu0 0.0
    %675 = vmatmul.mubr.f32.gmra.mrb[0].mxu0 %v541
    %v676 = vpop.f32.mrb[0].mxu0
    %v677 = vadd.f32 %v505, %v676
    %v678 = vpop.f32.mrb[0].mxu0
    %679 = vmatprep.mubr.f32.mxu0 0.0
    %680 = vmatmul.mubr.f32.gmra.mrb[0].mxu0 %v544
    %v681 = vpop.f32.mrb[0].mxu0
    %v682 = vadd.f32 %v505, %v681
    %v683 = vpop.f32.mrb[0].mxu0
    %684 = vmatprep.mubr.f32.mxu0 0.0
    %685 = vmatmul.mubr.f32.gmra.mrb[0].mxu0 %v547
    %v686 = vpop.f32.mrb[0].mxu0
    %v687 = vadd.f32 %v505, %v686
    %v688 = vpop.f32.mrb[0].mxu0
    %689 = vmatprep.mubr.f32.mxu0 0.0
    %690 = vmatmul.mubr.f32.gmra.mrb[0].mxu0 %v550
    %v691 = vpop.f32.mrb[0].mxu0
    %v692 = vadd.f32 %v505, %v691
    %v693 = vpop.f32.mrb[0].mxu0
    %694 = vmatprep.mubr.f32.mxu0 0.0
    %695 = vmatmul.mubr.f32.gmra.mrb[0].mxu0 %v553
    %v696 = vpop.f32.mrb[0].mxu0
    %v697 = vadd.f32 %v505, %v696
    %v698 = vpop.f32.mrb[0].mxu0
    %699 = vdwg.mxu0
    %700 = vst [vmem:[#allocation2] sm:$0xff] %v622
    %701 = vst [vmem:[#allocation2 + $0x8] sm:$0xff] %v627
    %702 = vst [vmem:[#allocation2 + $0x10] sm:$0xff] %v632
    %703 = vst [vmem:[#allocation2 + $0x18] sm:$0xff] %v637
    %704 = vst [vmem:[#allocation2 + $0x20] sm:$0xff] %v642
    %705 = vst [vmem:[#allocation2 + $0x28] sm:$0xff] %v647
    %706 = vst [vmem:[#allocation2 + $0x30] sm:$0xff] %v652
    %707 = vst [vmem:[#allocation2 + $0x38] sm:$0xff] %v657
    %708 = vst [vmem:[#allocation2 + $0x40] sm:$0xff] %v662
    %709 = vst [vmem:[#allocation2 + $0x48] sm:$0xff] %v667
    %710 = vst [vmem:[#allocation2 + $0x50] sm:$0xff] %v672
    %711 = vst [vmem:[#allocation2 + $0x58] sm:$0xff] %v677
    %712 = vst [vmem:[#allocation2 + $0x60] sm:$0xff] %v682
    %713 = vst [vmem:[#allocation2 + $0x68] sm:$0xff] %v687
    %714 = vst [vmem:[#allocation2 + $0x70] sm:$0xff] %v692
    %715 = vst [vmem:[#allocation2 + $0x78] sm:$0xff] %v697
    %v716 = vlaneseq
    %v717 = vand.u32 %v716, 127
    %vm718 = vcmp.lt.s32.totalorder %v717, 16
    %v719 = vsel %vm718, %v622, -1e+30
    %v720 = vsel %vm718, %v627, -1e+30
    %v721 = vsel %vm718, %v632, -1e+30
    %v722 = vsel %vm718, %v637, -1e+30
    %v723 = vsel %vm718, %v642, -1e+30
    %v724 = vsel %vm718, %v647, -1e+30
    %v725 = vsel %vm718, %v652, -1e+30
    %v726 = vsel %vm718, %v657, -1e+30
    %v727 = vsel %vm718, %v662, -1e+30
    %v728 = vsel %vm718, %v667, -1e+30
    %v729 = vsel %vm718, %v672, -1e+30
    %v730 = vsel %vm718, %v677, -1e+30
    %v731 = vsel %vm718, %v682, -1e+30
    %v732 = vsel %vm718, %v687, -1e+30
    %v733 = vsel %vm718, %v692, -1e+30
    %v734 = vsel %vm718, %v697, -1e+30
    %735 = vmax.xlane.f32.xlu0 %v719
    %v736 = vpop.xlane.xlu0 %735
    %737 = vmax.xlane.f32.xlu0 %v720
    %v738 = vpop.xlane.xlu0 %737
    %739 = vmax.xlane.f32.xlu0 %v721
    %v740 = vpop.xlane.xlu0 %739
    %741 = vmax.xlane.f32.xlu0 %v722
    %v742 = vpop.xlane.xlu0 %741
    %743 = vmax.xlane.f32.xlu0 %v723
    %v744 = vpop.xlane.xlu0 %743
    %745 = vmax.xlane.f32.xlu0 %v724
    %v746 = vpop.xlane.xlu0 %745
    %747 = vmax.xlane.f32.xlu0 %v725
    %v748 = vpop.xlane.xlu0 %747
    %749 = vmax.xlane.f32.xlu0 %v726
    %v750 = vpop.xlane.xlu0 %749
    %751 = vmax.xlane.f32.xlu0 %v727
    %v752 = vpop.xlane.xlu0 %751
    %753 = vmax.xlane.f32.xlu0 %v728
    %v754 = vpop.xlane.xlu0 %753
    %755 = vmax.xlane.f32.xlu0 %v729
    %v756 = vpop.xlane.xlu0 %755
    %757 = vmax.xlane.f32.xlu0 %v730
    %v758 = vpop.xlane.xlu0 %757
    %759 = vmax.xlane.f32.xlu0 %v731
    %v760 = vpop.xlane.xlu0 %759
    %761 = vmax.xlane.f32.xlu0 %v732
    %v762 = vpop.xlane.xlu0 %761
    %763 = vmax.xlane.f32.xlu0 %v733
    %v764 = vpop.xlane.xlu0 %763
    %765 = vmax.xlane.f32.xlu0 %v734
    %v766 = vpop.xlane.xlu0 %765
    %v767 = vsub.f32 %v622, %v736
    %v768 = vsub.f32 %v627, %v738
    %v769 = vsub.f32 %v632, %v740
    %v770 = vsub.f32 %v637, %v742
    %v771 = vsub.f32 %v642, %v744
    %v772 = vsub.f32 %v647, %v746
    %v773 = vsub.f32 %v652, %v748
    %v774 = vsub.f32 %v657, %v750
    %v775 = vsub.f32 %v662, %v752
    %v776 = vsub.f32 %v667, %v754
    %v777 = vsub.f32 %v672, %v756
    %v778 = vsub.f32 %v677, %v758
    %v779 = vsub.f32 %v682, %v760
    %v780 = vsub.f32 %v687, %v762
    %v781 = vsub.f32 %v692, %v764
    %v782 = vsub.f32 %v697, %v766
    %v783 = vmul.f32 %v767, 1.442695
    %v784 = vpow.pop %v783
    %v785 = vmul.f32 %v768, 1.442695
    %v786 = vpow.pop %v785
    %v787 = vmul.f32 %v769, 1.442695
    %v788 = vpow.pop %v787
    %v789 = vmul.f32 %v770, 1.442695
    %v790 = vpow.pop %v789
    %v791 = vmul.f32 %v771, 1.442695
    %v792 = vpow.pop %v791
    %v793 = vmul.f32 %v772, 1.442695
    %v794 = vpow.pop %v793
    %v795 = vmul.f32 %v773, 1.442695
    %v796 = vpow.pop %v795
    %v797 = vmul.f32 %v774, 1.442695
    %v798 = vpow.pop %v797
    %v799 = vmul.f32 %v775, 1.442695
    %v800 = vpow.pop %v799
    %v801 = vmul.f32 %v776, 1.442695
    %v802 = vpow.pop %v801
    %v803 = vmul.f32 %v777, 1.442695
    %v804 = vpow.pop %v803
    %v805 = vmul.f32 %v778, 1.442695
    %v806 = vpow.pop %v805
    %v807 = vmul.f32 %v779, 1.442695
    %v808 = vpow.pop %v807
    %v809 = vmul.f32 %v780, 1.442695
    %v810 = vpow.pop %v809
    %v811 = vmul.f32 %v781, 1.442695
    %v812 = vpow.pop %v811
    %v813 = vmul.f32 %v782, 1.442695
    %v814 = vpow.pop %v813
    %v815 = vsel %vm718, %v784, 0.0
    %v816 = vsel %vm718, %v786, 0.0
    %v817 = vsel %vm718, %v788, 0.0
    %v818 = vsel %vm718, %v790, 0.0
    %v819 = vsel %vm718, %v792, 0.0
    %v820 = vsel %vm718, %v794, 0.0
    %v821 = vsel %vm718, %v796, 0.0
    %v822 = vsel %vm718, %v798, 0.0
    %v823 = vsel %vm718, %v800, 0.0
    %v824 = vsel %vm718, %v802, 0.0
    %v825 = vsel %vm718, %v804, 0.0
    %v826 = vsel %vm718, %v806, 0.0
    %v827 = vsel %vm718, %v808, 0.0
    %v828 = vsel %vm718, %v810, 0.0
    %v829 = vsel %vm718, %v812, 0.0
    %v830 = vsel %vm718, %v814, 0.0
    %831 = vadd.xlane.f32.xlu0 %v815
    %v832 = vpop.xlane.xlu0 %831
    %833 = vadd.xlane.f32.xlu0 %v816
    %v834 = vpop.xlane.xlu0 %833
    %835 = vadd.xlane.f32.xlu0 %v817
    %v836 = vpop.xlane.xlu0 %835
    %837 = vadd.xlane.f32.xlu0 %v818
    %v838 = vpop.xlane.xlu0 %837
    %839 = vadd.xlane.f32.xlu0 %v819
    %v840 = vpop.xlane.xlu0 %839
    %841 = vadd.xlane.f32.xlu0 %v820
    %v842 = vpop.xlane.xlu0 %841
    %843 = vadd.xlane.f32.xlu0 %v821
    %v844 = vpop.xlane.xlu0 %843
    %845 = vadd.xlane.f32.xlu0 %v822
    %v846 = vpop.xlane.xlu0 %845
    %847 = vadd.xlane.f32.xlu0 %v823
    %v848 = vpop.xlane.xlu0 %847
    %849 = vadd.xlane.f32.xlu0 %v824
    %v850 = vpop.xlane.xlu0 %849
    %851 = vadd.xlane.f32.xlu0 %v825
    %v852 = vpop.xlane.xlu0 %851
    %853 = vadd.xlane.f32.xlu0 %v826
    %v854 = vpop.xlane.xlu0 %853
    %855 = vadd.xlane.f32.xlu0 %v827
    %v856 = vpop.xlane.xlu0 %855
    %857 = vadd.xlane.f32.xlu0 %v828
    %v858 = vpop.xlane.xlu0 %857
    %859 = vadd.xlane.f32.xlu0 %v829
    %v860 = vpop.xlane.xlu0 %859
    %861 = vadd.xlane.f32.xlu0 %v830
    %v862 = vpop.xlane.xlu0 %861
    %v863 = vrcp.pop %v832
    %v864 = vmul.f32 %v815, %v863
    %v865 = vrcp.pop %v834
    %v866 = vmul.f32 %v816, %v865
    %v867 = vrcp.pop %v836
    %v868 = vmul.f32 %v817, %v867
    %v869 = vrcp.pop %v838
    %v870 = vmul.f32 %v818, %v869
    %v871 = vrcp.pop %v840
    %v872 = vmul.f32 %v819, %v871
    %v873 = vrcp.pop %v842
    %v874 = vmul.f32 %v820, %v873
    %v875 = vrcp.pop %v844
    %v876 = vmul.f32 %v821, %v875
    %v877 = vrcp.pop %v846
    %v878 = vmul.f32 %v822, %v877
    %v879 = vrcp.pop %v848
    %v880 = vmul.f32 %v823, %v879
    %v881 = vrcp.pop %v850
    %v882 = vmul.f32 %v824, %v881
    %v883 = vrcp.pop %v852
    %v884 = vmul.f32 %v825, %v883
    %v885 = vrcp.pop %v854
    %v886 = vmul.f32 %v826, %v885
    %v887 = vrcp.pop %v856
    %v888 = vmul.f32 %v827, %v887
    %v889 = vrcp.pop %v858
    %v890 = vmul.f32 %v828, %v889
    %v891 = vrcp.pop %v860
    %v892 = vmul.f32 %v829, %v891
    %v893 = vrcp.pop %v862
    %v894 = vmul.f32 %v830, %v893
    %895 = vst [vmem:[#allocation4] sm:$0xff] %v864
    %896 = vst [vmem:[#allocation4 + $0x8] sm:$0xff] %v866
    %897 = vst [vmem:[#allocation4 + $0x10] sm:$0xff] %v868
    %898 = vst [vmem:[#allocation4 + $0x18] sm:$0xff] %v870
    %899 = vst [vmem:[#allocation4 + $0x20] sm:$0xff] %v872
    %900 = vst [vmem:[#allocation4 + $0x28] sm:$0xff] %v874
    %901 = vst [vmem:[#allocation4 + $0x30] sm:$0xff] %v876
    %902 = vst [vmem:[#allocation4 + $0x38] sm:$0xff] %v878
    %903 = vst [vmem:[#allocation4 + $0x40] sm:$0xff] %v880
    %904 = vst [vmem:[#allocation4 + $0x48] sm:$0xff] %v882
    %905 = vst [vmem:[#allocation4 + $0x50] sm:$0xff] %v884
    %906 = vst [vmem:[#allocation4 + $0x58] sm:$0xff] %v886
    %907 = vst [vmem:[#allocation4 + $0x60] sm:$0xff] %v888
    %908 = vst [vmem:[#allocation4 + $0x68] sm:$0xff] %v890
    %909 = vst [vmem:[#allocation4 + $0x70] sm:$0xff] %v892
    %910 = vst [vmem:[#allocation4 + $0x78] sm:$0xff] %v894
    // Predicated region
    $region30: #{tpu_custom_call.1} parent=1 // pred_check
      _
    $region31: #{tpu_custom_call.1} parent=1 // pred_check_branch
      %912 = sbr.rel (0) target = $region33
    $region32: #{tpu_custom_call.1} parent=1 // pred_region
      %s914 = ssub.s32 2048, 2048
      %915 = vsyncadd [#allocation3], %s914
      %s916 = sshll.u32 [#allocation2], 4
      %s917 = int_to_ptr.vmem [resolvable:$true] %s916
      %922 = dma.vmem_to_hbm [thread:$0]  %s917, 2048, %s7, [#allocation3], 128, 128, 8
    $region33: #{tpu_custom_call.1} parent=1 // pred_fallthru
      _
    // Predicated region
    $region34: #{tpu_custom_call.1} parent=1 // pred_check
      _
    $region35: #{tpu_custom_call.1} parent=1 // pred_check_branch
      %924 = sbr.rel (0) target = $region37
    $region36: #{tpu_custom_call.1} parent=1 // pred_region
      %s926 = ssub.s32 2048, 2048
      %927 = vsyncadd [#allocation5], %s926
      %s928 = sshll.u32 [#allocation4], 4
      %s929 = int_to_ptr.vmem [resolvable:$true] %s928
      %934 = dma.vmem_to_hbm [thread:$0]  %s929, 2048, %s8, [#allocation5], 128, 128, 8
    $region37: #{tpu_custom_call.1} parent=1 // pred_fallthru
      _
    // Predicated region
    $region38: #{tpu_custom_call.1} parent=1 // pred_check
      _
    $region39: #{tpu_custom_call.1} parent=1 // pred_check_branch
      %936 = sbr.rel (0) target = $region41
    $region40: #{tpu_custom_call.1} parent=1 // pred_region
      %937 = dma.done [#allocation3], 2048
    $region41: #{tpu_custom_call.1} parent=1 // pred_fallthru
      _
    // Predicated region
    $region42: #{tpu_custom_call.1} parent=1 // pred_check
      _
    $region43: #{tpu_custom_call.1} parent=1 // pred_check_branch
      %939 = sbr.rel (0) target = $region45
    $region44: #{tpu_custom_call.1} parent=1 // pred_region
      %940 = dma.done [#allocation5], 2048
    $region45: #{tpu_custom_call.1} parent=1 // pred_fallthru
      _
    %941 = vsyncpa [#allocation3], 1
    %942 = vsyncpa [#allocation5], 1

</llo_original>
